<compile_context>
chip_gen: v5e
topology: v5e:2x2
jax: 0.10.0
libtpu: 0.0.40
codegen_flags: <defaults>
</compile_context>

<pallas_src>
import functools

import jax
import jax.numpy as jnp
from jax.experimental import pallas as pl
from jax.experimental.pallas import tpu as pltpu


# ----------------------------------------------------------------------------
# Pallas kernel: whole TCN (all residual blocks) fused
# ----------------------------------------------------------------------------
def _tcn_fused_kernel(*refs, layer_cfgs, K):
    """refs = (x_ref, *param_refs, out_ref).

    layer_cfgs: tuple of (dilation, apply_relu2, use_conv3) per layer (static).
    Per layer the param refs are: w1 (K*Cin, F), b1 (1, F),
                                  w2 (K*F, Cout), b2 (1, Cout),
                                  [w3 (Cin, Cout), b3 (1, Cout)]  iff use_conv3.
    """
    x_ref = refs[0]
    out_ref = refs[-1]
    prm = refs[1:-1]

    x = x_ref[...]                      # (Bt, T, Cin) float32
    Bt, T, _ = x.shape

    p = 0
    for (dilation, apply_relu2, use_conv3) in layer_cfgs:
        w1 = prm[p][...]
        b1 = prm[p + 1][...]
        w2 = prm[p + 2][...]
        b2 = prm[p + 3][...]
        p += 4

        P = dilation * (K - 1)          # causal left padding
        Cin = x.shape[2]
        F_ = w1.shape[1]
        Cout = w2.shape[1]

        def im2col(v, C):
            # Zero left-pad in registers (trace time), gather the K dilated
            # taps along the lane axis, flatten to a single matmul operand.
            vp = jnp.concatenate(
                [jnp.zeros((Bt, P, C), jnp.float32), v], axis=1)
            taps = jnp.concatenate(
                [vp[:, k * dilation:k * dilation + T, :] for k in range(K)],
                axis=-1)                # (Bt, T, K*C)
            return taps.reshape(Bt * T, K * C)

        # ---- conv1 (dilated causal) -> ReLU ----
        h = jnp.maximum(
            jnp.dot(im2col(x, Cin), w1,
                    preferred_element_type=jnp.float32) + b1, 0.0)
        # TODO(synk): dropout_fn is identity (eval mode); training-mode
        # stochastic dropout is not implemented.

        # ---- conv2 (dilated causal), ReLU only if not the last block ----
        y = jnp.dot(im2col(h.reshape(Bt, T, F_), F_), w2,
                    preferred_element_type=jnp.float32) + b2
        if apply_relu2:
            y = jnp.maximum(y, 0.0)

        # ---- residual branch (1x1 conv only when channel counts differ) ----
        res = x.reshape(Bt * T, Cin)
        if use_conv3:
            w3 = prm[p][...]
            b3 = prm[p + 1][...]
            p += 2
            res = jnp.dot(res, w3, preferred_element_type=jnp.float32) + b3

        x = (y + res).reshape(Bt, T, Cout)

    out_ref[...] = x.astype(out_ref.dtype)


def tcn_forward(x_in, params, *, kernel_size, num_layers, dilation_base,
                target_size):
    """x_in: (B, T, input_size) -> (B, T, target_size).  One fused pallas_call."""
    B, T, Cin0 = x_in.shape

    flat_params = []
    layer_cfgs = []
    for i in range(num_layers):
        w1, b1, w2, b2, w3, b3 = params[i]
        K, cin, f_ = w1.shape
        cout = w2.shape[2]
        use_conv3 = (cin != cout)
        layer_cfgs.append((dilation_base ** i, i < num_layers - 1, use_conv3))
        # Pre-reshape weights to the im2col contraction layout on the host side
        # so the kernel never relayouts weights.
        flat_params += [w1.reshape(K * cin, f_), b1,
                        w2.reshape(K * f_, cout), b2]
        if use_conv3:
            flat_params += [w3, b3]

    kernel = functools.partial(_tcn_fused_kernel,
                               layer_cfgs=tuple(layer_cfgs), K=kernel_size)

    # Weights: full-array blocks with constant index maps -> fetched once,
    # resident in VMEM across all grid steps.
    param_specs = [
        pl.BlockSpec(p.shape, lambda b, nd=p.ndim: (0,) * nd)
        for p in flat_params
    ]

    out = pl.pallas_call(
        kernel,
        out_shape=jax.ShapeDtypeStruct((B, T, target_size), x_in.dtype),
        grid=(B,),
        in_specs=[pl.BlockSpec((1, T, Cin0), lambda b: (b, 0, 0))] + param_specs,
        out_specs=pl.BlockSpec((1, T, target_size), lambda b: (b, 0, 0)),
        compiler_params=pltpu.CompilerParams(
            dimension_semantics=("parallel",)),
    )(x_in, *flat_params)

    # == PyTorch .view(batch, -1, target_size) (no-op at this layout)
    return out.reshape(B, -1, target_size)


# ----------------------------------------------------------------------------
# TCNModule: parameter construction
# ----------------------------------------------------------------------------
def init_tcn_params(key, *, input_size, kernel_size, num_filters, num_layers,
                    target_size):
    """Deterministic synthetic params. Conv1d weights stored as (K, Cin, Cout)."""
    params = []
    for i in range(num_layers):
        in_dim = input_size if i == 0 else num_filters
        out_dim = target_size if i == num_layers - 1 else num_filters
        key, k1, k2, k3, k4, k5, k6 = jax.random.split(key, 7)
        s1 = 1.0 / jnp.sqrt(in_dim * kernel_size)
        s2 = 1.0 / jnp.sqrt(num_filters * kernel_size)
        w1 = jax.random.uniform(k1, (kernel_size, in_dim, num_filters),
                                jnp.float32, -s1, s1)
        b1 = jax.random.uniform(k2, (1, num_filters), jnp.float32, -s1, s1)
        w2 = jax.random.uniform(k3, (kernel_size, num_filters, out_dim),
                                jnp.float32, -s2, s2)
        b2 = jax.random.uniform(k4, (1, out_dim), jnp.float32, -s2, s2)
        if in_dim != out_dim:
            s3 = 1.0 / jnp.sqrt(in_dim)
            w3 = jax.random.uniform(k5, (in_dim, out_dim), jnp.float32, -s3, s3)
            b3 = jax.random.uniform(k6, (1, out_dim), jnp.float32, -s3, s3)
        else:  # conv3 unused -> never passed to the kernel
            w3 = jnp.zeros((in_dim, out_dim), jnp.float32)
            b3 = jnp.zeros((1, out_dim), jnp.float32)
        params.append((w1, b1, w2, b2, w3, b3))
    return params
    # NOTE: weight_norm is a reparameterization of the same effective weight;
    # with synthetic weights it is folded directly into w1/w2.


# ----------------------------------------------------------------------------
# Pure-JAX reference (lax.conv_general_dilated) for verification
# ----------------------------------------------------------------------------
def _ref_block(x, params, *, kernel_size, dilation, apply_relu2, use_conv3):
    w1, b1, w2, b2, w3, b3 = params
    P = dilation * (kernel_size - 1)
    dn = ('NWC', 'WIO', 'NWC')
    xp = jnp.pad(x, ((0, 0), (P, 0), (0, 0)))
    h = jax.lax.conv_general_dilated(xp, w1, (1,), 'VALID',
                                     rhs_dilation=(dilation,),
                                     dimension_numbers=dn) + b1
    h = jax.nn.relu(h)
    hp = jnp.pad(h, ((0, 0), (P, 0), (0, 0)))
    y = jax.lax.conv_general_dilated(hp, w2, (1,), 'VALID',
                                     rhs_dilation=(dilation,),
                                     dimension_numbers=dn) + b2
    if apply_relu2:
        y = jax.nn.relu(y)
    res = x
    if use_conv3:
        res = jnp.einsum('btc,co->bto', x, w3) + b3
    return y + res


def tcn_reference(x_in, params, *, kernel_size, num_layers, dilation_base,
                  target_size):
    x = x_in
    for i in range(num_layers):
        x = _ref_block(x, params[i],
                       kernel_size=kernel_size,
                       dilation=dilation_base ** i,
                       apply_relu2=(i < num_layers - 1),
                       use_conv3=(params[i][0].shape[1] != params[i][2].shape[2]))
    return x.reshape(x.shape[0], -1, target_size)


# ----------------------------------------------------------------------------
if __name__ == "__main__":
    # Module hyperparameters (small, consistent with TCNModule.__init__)
    input_size = 3
    kernel_size = 3
    num_filters = 8
    num_layers = 3
    dilation_base = 2
    target_size = 2
    batch_size = 2
    input_chunk_length = 16

    key = jax.random.PRNGKey(0)
    key, kx, kp = jax.random.split(key, 3)
    x_in = jax.random.normal(kx, (batch_size, input_chunk_length, input_size),
                             jnp.float32)
    params = init_tcn_params(kp, input_size=input_size, kernel_size=kernel_size,
                             num_filters=num_filters, num_layers=num_layers,
                             target_size=target_size)

    out = tcn_forward(x_in, params, kernel_size=kernel_size,
                      num_layers=num_layers, dilation_base=dilation_base,
                      target_size=target_size)
    out = jax.block_until_ready(out)

    ref = tcn_reference(x_in, params, kernel_size=kernel_size,
                        num_layers=num_layers, dilation_base=dilation_base,
                        target_size=target_size)
    ref = jax.block_until_ready(ref)

    assert out.shape == (batch_size, input_chunk_length, target_size), out.shape
    assert jnp.allclose(out, ref, rtol=1e-4, atol=1e-4), (
        f"max abs diff {jnp.max(jnp.abs(out - ref))}")

    print("KERNEL_OK")
</pallas_src>

<mosaic_0001>
module attributes {stable_mosaic.version = 11 : i64} {
  func.func @_tcn_fused_kernel(%arg0: i32, %arg1: memref<1x16x3xf32, #tpu.memory_space<vmem>>, %arg2: memref<9x8xf32, #tpu.memory_space<vmem>>, %arg3: memref<1x8xf32, #tpu.memory_space<vmem>>, %arg4: memref<24x8xf32, #tpu.memory_space<vmem>>, %arg5: memref<1x8xf32, #tpu.memory_space<vmem>>, %arg6: memref<3x8xf32, #tpu.memory_space<vmem>>, %arg7: memref<1x8xf32, #tpu.memory_space<vmem>>, %arg8: memref<24x8xf32, #tpu.memory_space<vmem>>, %arg9: memref<1x8xf32, #tpu.memory_space<vmem>>, %arg10: memref<24x8xf32, #tpu.memory_space<vmem>>, %arg11: memref<1x8xf32, #tpu.memory_space<vmem>>, %arg12: memref<24x8xf32, #tpu.memory_space<vmem>>, %arg13: memref<1x8xf32, #tpu.memory_space<vmem>>, %arg14: memref<24x2xf32, #tpu.memory_space<vmem>>, %arg15: memref<1x2xf32, #tpu.memory_space<vmem>>, %arg16: memref<8x2xf32, #tpu.memory_space<vmem>>, %arg17: memref<1x2xf32, #tpu.memory_space<vmem>>, %arg18: memref<1x16x2xf32, #tpu.memory_space<vmem>>) attributes {dimension_semantics = [#tpu.dimension_semantics<parallel>], iteration_bounds = array<i64: 2>, scalar_prefetch = 0 : i64, scratch_operands = 0 : i64, tpu.core_type = #tpu.core_type<tc>, window_params = [{transform_indices = @transform_0, window_bounds = array<i64: 1, 16, 3>}, {pipeline_mode = #tpu.pipeline_mode<synchronous>, transform_indices = @transform_1, window_bounds = array<i64: 9, 8>}, {pipeline_mode = #tpu.pipeline_mode<synchronous>, transform_indices = @transform_2, window_bounds = array<i64: 1, 8>}, {pipeline_mode = #tpu.pipeline_mode<synchronous>, transform_indices = @transform_3, window_bounds = array<i64: 24, 8>}, {pipeline_mode = #tpu.pipeline_mode<synchronous>, transform_indices = @transform_4, window_bounds = array<i64: 1, 8>}, {pipeline_mode = #tpu.pipeline_mode<synchronous>, transform_indices = @transform_5, window_bounds = array<i64: 3, 8>}, {pipeline_mode = #tpu.pipeline_mode<synchronous>, transform_indices = @transform_6, window_bounds = array<i64: 1, 8>}, {pipeline_mode = #tpu.pipeline_mode<synchronous>, transform_indices = @transform_7, window_bounds = array<i64: 24, 8>}, {pipeline_mode = #tpu.pipeline_mode<synchronous>, transform_indices = @transform_8, window_bounds = array<i64: 1, 8>}, {pipeline_mode = #tpu.pipeline_mode<synchronous>, transform_indices = @transform_9, window_bounds = array<i64: 24, 8>}, {pipeline_mode = #tpu.pipeline_mode<synchronous>, transform_indices = @transform_10, window_bounds = array<i64: 1, 8>}, {pipeline_mode = #tpu.pipeline_mode<synchronous>, transform_indices = @transform_11, window_bounds = array<i64: 24, 8>}, {pipeline_mode = #tpu.pipeline_mode<synchronous>, transform_indices = @transform_12, window_bounds = array<i64: 1, 8>}, {pipeline_mode = #tpu.pipeline_mode<synchronous>, transform_indices = @transform_13, window_bounds = array<i64: 24, 2>}, {pipeline_mode = #tpu.pipeline_mode<synchronous>, transform_indices = @transform_14, window_bounds = array<i64: 1, 2>}, {pipeline_mode = #tpu.pipeline_mode<synchronous>, transform_indices = @transform_15, window_bounds = array<i64: 8, 2>}, {pipeline_mode = #tpu.pipeline_mode<synchronous>, transform_indices = @transform_16, window_bounds = array<i64: 1, 2>}, {transform_indices = @transform_17, window_bounds = array<i64: 1, 16, 2>}]} {
    %c0 = arith.constant 0 : index
    %c0_0 = arith.constant 0 : index
    %c0_1 = arith.constant 0 : index
    %0 = vector.load %arg1[%c0, %c0_0, %c0_1] : memref<1x16x3xf32, #tpu.memory_space<vmem>>, vector<1x16x3xf32>
    %c0_2 = arith.constant 0 : index
    %c0_3 = arith.constant 0 : index
    %1 = vector.load %arg2[%c0_2, %c0_3] : memref<9x8xf32, #tpu.memory_space<vmem>>, vector<9x8xf32>
    %c0_4 = arith.constant 0 : index
    %c0_5 = arith.constant 0 : index
    %2 = vector.load %arg3[%c0_4, %c0_5] : memref<1x8xf32, #tpu.memory_space<vmem>>, vector<1x8xf32>
    %c0_6 = arith.constant 0 : index
    %c0_7 = arith.constant 0 : index
    %3 = vector.load %arg4[%c0_6, %c0_7] : memref<24x8xf32, #tpu.memory_space<vmem>>, vector<24x8xf32>
    %c0_8 = arith.constant 0 : index
    %c0_9 = arith.constant 0 : index
    %4 = vector.load %arg5[%c0_8, %c0_9] : memref<1x8xf32, #tpu.memory_space<vmem>>, vector<1x8xf32>
    %cst = arith.constant 0.000000e+00 : f32
    %5 = vector.broadcast %cst : f32 to vector<1x2x3xf32>
    %6 = tpu.concatenate %5, %0 in 1 : vector<1x2x3xf32>, vector<1x16x3xf32> -> vector<1x18x3xf32>
    %7 = vector.extract_strided_slice %6 {offsets = [0, 0, 0], sizes = [1, 16, 3], strides = [1, 1, 1]} : vector<1x18x3xf32> to vector<1x16x3xf32>
    %8 = vector.extract_strided_slice %6 {offsets = [0, 1, 0], sizes = [1, 16, 3], strides = [1, 1, 1]} : vector<1x18x3xf32> to vector<1x16x3xf32>
    %9 = vector.extract_strided_slice %6 {offsets = [0, 2, 0], sizes = [1, 16, 3], strides = [1, 1, 1]} : vector<1x18x3xf32> to vector<1x16x3xf32>
    %10 = tpu.concatenate %7, %8, %9 in 2 : vector<1x16x3xf32>, vector<1x16x3xf32>, vector<1x16x3xf32> -> vector<1x16x9xf32>
    %11 = vector.shape_cast %10 : vector<1x16x9xf32> to vector<16x9xf32>
    %cst_10 = arith.constant dense<0.000000e+00> : vector<16x8xf32>
    %12 = tpu.matmul %11, %1, %cst_10 {dimension_numbers = #tpu.dot_dimension_numbers<[1], [0], [0], [1], [0, 0, 1, 1], [], []>} : vector<16x9xf32>, vector<9x8xf32>, vector<16x8xf32> -> vector<16x8xf32>
    %13 = vector.broadcast %2 : vector<1x8xf32> to vector<16x8xf32>
    %14 = arith.addf %12, %13 : vector<16x8xf32>
    %cst_11 = arith.constant 0.000000e+00 : f32
    %15 = vector.broadcast %cst_11 : f32 to vector<16x8xf32>
    %16 = arith.maximumf %14, %15 : vector<16x8xf32>
    %17 = vector.shape_cast %16 : vector<16x8xf32> to vector<1x16x8xf32>
    %cst_12 = arith.constant 0.000000e+00 : f32
    %18 = vector.broadcast %cst_12 : f32 to vector<1x2x8xf32>
    %19 = tpu.concatenate %18, %17 in 1 : vector<1x2x8xf32>, vector<1x16x8xf32> -> vector<1x18x8xf32>
    %20 = vector.extract_strided_slice %19 {offsets = [0, 0, 0], sizes = [1, 16, 8], strides = [1, 1, 1]} : vector<1x18x8xf32> to vector<1x16x8xf32>
    %21 = vector.extract_strided_slice %19 {offsets = [0, 1, 0], sizes = [1, 16, 8], strides = [1, 1, 1]} : vector<1x18x8xf32> to vector<1x16x8xf32>
    %22 = vector.extract_strided_slice %19 {offsets = [0, 2, 0], sizes = [1, 16, 8], strides = [1, 1, 1]} : vector<1x18x8xf32> to vector<1x16x8xf32>
    %23 = tpu.concatenate %20, %21, %22 in 2 : vector<1x16x8xf32>, vector<1x16x8xf32>, vector<1x16x8xf32> -> vector<1x16x24xf32>
    %24 = vector.shape_cast %23 : vector<1x16x24xf32> to vector<16x24xf32>
    %cst_13 = arith.constant dense<0.000000e+00> : vector<16x8xf32>
    %25 = tpu.matmul %24, %3, %cst_13 {dimension_numbers = #tpu.dot_dimension_numbers<[1], [0], [0], [1], [0, 0, 1, 1], [], []>} : vector<16x24xf32>, vector<24x8xf32>, vector<16x8xf32> -> vector<16x8xf32>
    %26 = vector.broadcast %4 : vector<1x8xf32> to vector<16x8xf32>
    %27 = arith.addf %25, %26 : vector<16x8xf32>
    %cst_14 = arith.constant 0.000000e+00 : f32
    %28 = vector.broadcast %cst_14 : f32 to vector<16x8xf32>
    %29 = arith.maximumf %27, %28 : vector<16x8xf32>
    %30 = vector.shape_cast %0 : vector<1x16x3xf32> to vector<16x3xf32>
    %c0_15 = arith.constant 0 : index
    %c0_16 = arith.constant 0 : index
    %31 = vector.load %arg6[%c0_15, %c0_16] : memref<3x8xf32, #tpu.memory_space<vmem>>, vector<3x8xf32>
    %c0_17 = arith.constant 0 : index
    %c0_18 = arith.constant 0 : index
    %32 = vector.load %arg7[%c0_17, %c0_18] : memref<1x8xf32, #tpu.memory_space<vmem>>, vector<1x8xf32>
    %cst_19 = arith.constant dense<0.000000e+00> : vector<16x8xf32>
    %33 = tpu.matmul %30, %31, %cst_19 {dimension_numbers = #tpu.dot_dimension_numbers<[1], [0], [0], [1], [0, 0, 1, 1], [], []>} : vector<16x3xf32>, vector<3x8xf32>, vector<16x8xf32> -> vector<16x8xf32>
    %34 = vector.broadcast %32 : vector<1x8xf32> to vector<16x8xf32>
    %35 = arith.addf %33, %34 : vector<16x8xf32>
    %36 = arith.addf %29, %35 : vector<16x8xf32>
    %37 = vector.shape_cast %36 : vector<16x8xf32> to vector<1x16x8xf32>
    %c0_20 = arith.constant 0 : index
    %c0_21 = arith.constant 0 : index
    %38 = vector.load %arg8[%c0_20, %c0_21] : memref<24x8xf32, #tpu.memory_space<vmem>>, vector<24x8xf32>
    %c0_22 = arith.constant 0 : index
    %c0_23 = arith.constant 0 : index
    %39 = vector.load %arg9[%c0_22, %c0_23] : memref<1x8xf32, #tpu.memory_space<vmem>>, vector<1x8xf32>
    %c0_24 = arith.constant 0 : index
    %c0_25 = arith.constant 0 : index
    %40 = vector.load %arg10[%c0_24, %c0_25] : memref<24x8xf32, #tpu.memory_space<vmem>>, vector<24x8xf32>
    %c0_26 = arith.constant 0 : index
    %c0_27 = arith.constant 0 : index
    %41 = vector.load %arg11[%c0_26, %c0_27] : memref<1x8xf32, #tpu.memory_space<vmem>>, vector<1x8xf32>
    %cst_28 = arith.constant 0.000000e+00 : f32
    %42 = vector.broadcast %cst_28 : f32 to vector<1x4x8xf32>
    %43 = tpu.concatenate %42, %37 in 1 : vector<1x4x8xf32>, vector<1x16x8xf32> -> vector<1x20x8xf32>
    %44 = vector.extract_strided_slice %43 {offsets = [0, 0, 0], sizes = [1, 16, 8], strides = [1, 1, 1]} : vector<1x20x8xf32> to vector<1x16x8xf32>
    %45 = vector.extract_strided_slice %43 {offsets = [0, 2, 0], sizes = [1, 16, 8], strides = [1, 1, 1]} : vector<1x20x8xf32> to vector<1x16x8xf32>
    %46 = vector.extract_strided_slice %43 {offsets = [0, 4, 0], sizes = [1, 16, 8], strides = [1, 1, 1]} : vector<1x20x8xf32> to vector<1x16x8xf32>
    %47 = tpu.concatenate %44, %45, %46 in 2 : vector<1x16x8xf32>, vector<1x16x8xf32>, vector<1x16x8xf32> -> vector<1x16x24xf32>
    %48 = vector.shape_cast %47 : vector<1x16x24xf32> to vector<16x24xf32>
    %cst_29 = arith.constant dense<0.000000e+00> : vector<16x8xf32>
    %49 = tpu.matmul %48, %38, %cst_29 {dimension_numbers = #tpu.dot_dimension_numbers<[1], [0], [0], [1], [0, 0, 1, 1], [], []>} : vector<16x24xf32>, vector<24x8xf32>, vector<16x8xf32> -> vector<16x8xf32>
    %50 = vector.broadcast %39 : vector<1x8xf32> to vector<16x8xf32>
    %51 = arith.addf %49, %50 : vector<16x8xf32>
    %cst_30 = arith.constant 0.000000e+00 : f32
    %52 = vector.broadcast %cst_30 : f32 to vector<16x8xf32>
    %53 = arith.maximumf %51, %52 : vector<16x8xf32>
    %54 = vector.shape_cast %53 : vector<16x8xf32> to vector<1x16x8xf32>
    %cst_31 = arith.constant 0.000000e+00 : f32
    %55 = vector.broadcast %cst_31 : f32 to vector<1x4x8xf32>
    %56 = tpu.concatenate %55, %54 in 1 : vector<1x4x8xf32>, vector<1x16x8xf32> -> vector<1x20x8xf32>
    %57 = vector.extract_strided_slice %56 {offsets = [0, 0, 0], sizes = [1, 16, 8], strides = [1, 1, 1]} : vector<1x20x8xf32> to vector<1x16x8xf32>
    %58 = vector.extract_strided_slice %56 {offsets = [0, 2, 0], sizes = [1, 16, 8], strides = [1, 1, 1]} : vector<1x20x8xf32> to vector<1x16x8xf32>
    %59 = vector.extract_strided_slice %56 {offsets = [0, 4, 0], sizes = [1, 16, 8], strides = [1, 1, 1]} : vector<1x20x8xf32> to vector<1x16x8xf32>
    %60 = tpu.concatenate %57, %58, %59 in 2 : vector<1x16x8xf32>, vector<1x16x8xf32>, vector<1x16x8xf32> -> vector<1x16x24xf32>
    %61 = vector.shape_cast %60 : vector<1x16x24xf32> to vector<16x24xf32>
    %cst_32 = arith.constant dense<0.000000e+00> : vector<16x8xf32>
    %62 = tpu.matmul %61, %40, %cst_32 {dimension_numbers = #tpu.dot_dimension_numbers<[1], [0], [0], [1], [0, 0, 1, 1], [], []>} : vector<16x24xf32>, vector<24x8xf32>, vector<16x8xf32> -> vector<16x8xf32>
    %63 = vector.broadcast %41 : vector<1x8xf32> to vector<16x8xf32>
    %64 = arith.addf %62, %63 : vector<16x8xf32>
    %cst_33 = arith.constant 0.000000e+00 : f32
    %65 = vector.broadcast %cst_33 : f32 to vector<16x8xf32>
    %66 = arith.maximumf %64, %65 : vector<16x8xf32>
    %67 = vector.shape_cast %37 : vector<1x16x8xf32> to vector<16x8xf32>
    %68 = arith.addf %66, %67 : vector<16x8xf32>
    %69 = vector.shape_cast %68 : vector<16x8xf32> to vector<1x16x8xf32>
    %c0_34 = arith.constant 0 : index
    %c0_35 = arith.constant 0 : index
    %70 = vector.load %arg12[%c0_34, %c0_35] : memref<24x8xf32, #tpu.memory_space<vmem>>, vector<24x8xf32>
    %c0_36 = arith.constant 0 : index
    %c0_37 = arith.constant 0 : index
    %71 = vector.load %arg13[%c0_36, %c0_37] : memref<1x8xf32, #tpu.memory_space<vmem>>, vector<1x8xf32>
    %c0_38 = arith.constant 0 : index
    %c0_39 = arith.constant 0 : index
    %72 = vector.load %arg14[%c0_38, %c0_39] : memref<24x2xf32, #tpu.memory_space<vmem>>, vector<24x2xf32>
    %c0_40 = arith.constant 0 : index
    %c0_41 = arith.constant 0 : index
    %73 = vector.load %arg15[%c0_40, %c0_41] : memref<1x2xf32, #tpu.memory_space<vmem>>, vector<1x2xf32>
    %cst_42 = arith.constant 0.000000e+00 : f32
    %74 = vector.broadcast %cst_42 : f32 to vector<1x8x8xf32>
    %75 = tpu.concatenate %74, %69 in 1 : vector<1x8x8xf32>, vector<1x16x8xf32> -> vector<1x24x8xf32>
    %76 = vector.extract_strided_slice %75 {offsets = [0, 0, 0], sizes = [1, 16, 8], strides = [1, 1, 1]} : vector<1x24x8xf32> to vector<1x16x8xf32>
    %77 = vector.extract_strided_slice %75 {offsets = [0, 4, 0], sizes = [1, 16, 8], strides = [1, 1, 1]} : vector<1x24x8xf32> to vector<1x16x8xf32>
    %78 = vector.extract_strided_slice %75 {offsets = [0, 8, 0], sizes = [1, 16, 8], strides = [1, 1, 1]} : vector<1x24x8xf32> to vector<1x16x8xf32>
    %79 = tpu.concatenate %76, %77, %78 in 2 : vector<1x16x8xf32>, vector<1x16x8xf32>, vector<1x16x8xf32> -> vector<1x16x24xf32>
    %80 = vector.shape_cast %79 : vector<1x16x24xf32> to vector<16x24xf32>
    %cst_43 = arith.constant dense<0.000000e+00> : vector<16x8xf32>
    %81 = tpu.matmul %80, %70, %cst_43 {dimension_numbers = #tpu.dot_dimension_numbers<[1], [0], [0], [1], [0, 0, 1, 1], [], []>} : vector<16x24xf32>, vector<24x8xf32>, vector<16x8xf32> -> vector<16x8xf32>
    %82 = vector.broadcast %71 : vector<1x8xf32> to vector<16x8xf32>
    %83 = arith.addf %81, %82 : vector<16x8xf32>
    %cst_44 = arith.constant 0.000000e+00 : f32
    %84 = vector.broadcast %cst_44 : f32 to vector<16x8xf32>
    %85 = arith.maximumf %83, %84 : vector<16x8xf32>
    %86 = vector.shape_cast %85 : vector<16x8xf32> to vector<1x16x8xf32>
    %cst_45 = arith.constant 0.000000e+00 : f32
    %87 = vector.broadcast %cst_45 : f32 to vector<1x8x8xf32>
    %88 = tpu.concatenate %87, %86 in 1 : vector<1x8x8xf32>, vector<1x16x8xf32> -> vector<1x24x8xf32>
    %89 = vector.extract_strided_slice %88 {offsets = [0, 0, 0], sizes = [1, 16, 8], strides = [1, 1, 1]} : vector<1x24x8xf32> to vector<1x16x8xf32>
    %90 = vector.extract_strided_slice %88 {offsets = [0, 4, 0], sizes = [1, 16, 8], strides = [1, 1, 1]} : vector<1x24x8xf32> to vector<1x16x8xf32>
    %91 = vector.extract_strided_slice %88 {offsets = [0, 8, 0], sizes = [1, 16, 8], strides = [1, 1, 1]} : vector<1x24x8xf32> to vector<1x16x8xf32>
    %92 = tpu.concatenate %89, %90, %91 in 2 : vector<1x16x8xf32>, vector<1x16x8xf32>, vector<1x16x8xf32> -> vector<1x16x24xf32>
    %93 = vector.shape_cast %92 : vector<1x16x24xf32> to vector<16x24xf32>
    %cst_46 = arith.constant dense<0.000000e+00> : vector<16x2xf32>
    %94 = tpu.matmul %93, %72, %cst_46 {dimension_numbers = #tpu.dot_dimension_numbers<[1], [0], [0], [1], [0, 0, 1, 1], [], []>} : vector<16x24xf32>, vector<24x2xf32>, vector<16x2xf32> -> vector<16x2xf32>
    %95 = vector.broadcast %73 : vector<1x2xf32> to vector<16x2xf32>
    %96 = arith.addf %94, %95 : vector<16x2xf32>
    %97 = vector.shape_cast %69 : vector<1x16x8xf32> to vector<16x8xf32>
    %c0_47 = arith.constant 0 : index
    %c0_48 = arith.constant 0 : index
    %98 = vector.load %arg16[%c0_47, %c0_48] : memref<8x2xf32, #tpu.memory_space<vmem>>, vector<8x2xf32>
    %c0_49 = arith.constant 0 : index
    %c0_50 = arith.constant 0 : index
    %99 = vector.load %arg17[%c0_49, %c0_50] : memref<1x2xf32, #tpu.memory_space<vmem>>, vector<1x2xf32>
    %cst_51 = arith.constant dense<0.000000e+00> : vector<16x2xf32>
    %100 = tpu.matmul %97, %98, %cst_51 {dimension_numbers = #tpu.dot_dimension_numbers<[1], [0], [0], [1], [0, 0, 1, 1], [], []>} : vector<16x8xf32>, vector<8x2xf32>, vector<16x2xf32> -> vector<16x2xf32>
    %101 = vector.broadcast %99 : vector<1x2xf32> to vector<16x2xf32>
    %102 = arith.addf %100, %101 : vector<16x2xf32>
    %103 = arith.addf %96, %102 : vector<16x2xf32>
    %104 = vector.shape_cast %103 : vector<16x2xf32> to vector<1x16x2xf32>
    %c0_52 = arith.constant 0 : index
    %c0_53 = arith.constant 0 : index
    %c0_54 = arith.constant 0 : index
    %105 = vector.load %arg18[%c0_52, %c0_53, %c0_54] : memref<1x16x2xf32, #tpu.memory_space<vmem>>, vector<1x16x2xf32>
    tpu.vector_store %arg18[%c0_52, %c0_53, %c0_54], %104 {strides = array<i32>} : memref<1x16x2xf32, #tpu.memory_space<vmem>>, vector<1x16x2xf32>,
    return
  }
  func.func @transform_0(%arg0: i32) -> (i32, i32, i32) {
    %c0_i32 = arith.constant 0 : i32
    %c0_i32_0 = arith.constant 0 : i32
    %c0_i32_1 = arith.constant 0 : i32
    return %arg0, %c0_i32, %c0_i32_0 : i32, i32, i32
  }
  func.func @transform_1(%arg0: i32) -> (i32, i32) {
    %c0_i32 = arith.constant 0 : i32
    %c0_i32_0 = arith.constant 0 : i32
    %c0_i32_1 = arith.constant 0 : i32
    return %c0_i32, %c0_i32_0 : i32, i32
  }
  func.func @transform_2(%arg0: i32) -> (i32, i32) {
    %c0_i32 = arith.constant 0 : i32
    %c0_i32_0 = arith.constant 0 : i32
    %c0_i32_1 = arith.constant 0 : i32
    return %c0_i32, %c0_i32_0 : i32, i32
  }
  func.func @transform_3(%arg0: i32) -> (i32, i32) {
    %c0_i32 = arith.constant 0 : i32
    %c0_i32_0 = arith.constant 0 : i32
    %c0_i32_1 = arith.constant 0 : i32
    return %c0_i32, %c0_i32_0 : i32, i32
  }
  func.func @transform_4(%arg0: i32) -> (i32, i32) {
    %c0_i32 = arith.constant 0 : i32
    %c0_i32_0 = arith.constant 0 : i32
    %c0_i32_1 = arith.constant 0 : i32
    return %c0_i32, %c0_i32_0 : i32, i32
  }
  func.func @transform_5(%arg0: i32) -> (i32, i32) {
    %c0_i32 = arith.constant 0 : i32
    %c0_i32_0 = arith.constant 0 : i32
    %c0_i32_1 = arith.constant 0 : i32
    return %c0_i32, %c0_i32_0 : i32, i32
  }
  func.func @transform_6(%arg0: i32) -> (i32, i32) {
    %c0_i32 = arith.constant 0 : i32
    %c0_i32_0 = arith.constant 0 : i32
    %c0_i32_1 = arith.constant 0 : i32
    return %c0_i32, %c0_i32_0 : i32, i32
  }
  func.func @transform_7(%arg0: i32) -> (i32, i32) {
    %c0_i32 = arith.constant 0 : i32
    %c0_i32_0 = arith.constant 0 : i32
    %c0_i32_1 = arith.constant 0 : i32
    return %c0_i32, %c0_i32_0 : i32, i32
  }
  func.func @transform_8(%arg0: i32) -> (i32, i32) {
    %c0_i32 = arith.constant 0 : i32
    %c0_i32_0 = arith.constant 0 : i32
    %c0_i32_1 = arith.constant 0 : i32
    return %c0_i32, %c0_i32_0 : i32, i32
  }
  func.func @transform_9(%arg0: i32) -> (i32, i32) {
    %c0_i32 = arith.constant 0 : i32
    %c0_i32_0 = arith.constant 0 : i32
    %c0_i32_1 = arith.constant 0 : i32
    return %c0_i32, %c0_i32_0 : i32, i32
  }
  func.func @transform_10(%arg0: i32) -> (i32, i32) {
    %c0_i32 = arith.constant 0 : i32
    %c0_i32_0 = arith.constant 0 : i32
    %c0_i32_1 = arith.constant 0 : i32
    return %c0_i32, %c0_i32_0 : i32, i32
  }
  func.func @transform_11(%arg0: i32) -> (i32, i32) {
    %c0_i32 = arith.constant 0 : i32
    %c0_i32_0 = arith.constant 0 : i32
    %c0_i32_1 = arith.constant 0 : i32
    return %c0_i32, %c0_i32_0 : i32, i32
  }
  func.func @transform_12(%arg0: i32) -> (i32, i32) {
    %c0_i32 = arith.constant 0 : i32
    %c0_i32_0 = arith.constant 0 : i32
    %c0_i32_1 = arith.constant 0 : i32
    return %c0_i32, %c0_i32_0 : i32, i32
  }
  func.func @transform_13(%arg0: i32) -> (i32, i32) {
    %c0_i32 = arith.constant 0 : i32
    %c0_i32_0 = arith.constant 0 : i32
    %c0_i32_1 = arith.constant 0 : i32
    return %c0_i32, %c0_i32_0 : i32, i32
  }
  func.func @transform_14(%arg0: i32) -> (i32, i32) {
    %c0_i32 = arith.constant 0 : i32
    %c0_i32_0 = arith.constant 0 : i32
    %c0_i32_1 = arith.constant 0 : i32
    return %c0_i32, %c0_i32_0 : i32, i32
  }
  func.func @transform_15(%arg0: i32) -> (i32, i32) {
    %c0_i32 = arith.constant 0 : i32
    %c0_i32_0 = arith.constant 0 : i32
    %c0_i32_1 = arith.constant 0 : i32
    return %c0_i32, %c0_i32_0 : i32, i32
  }
  func.func @transform_16(%arg0: i32) -> (i32, i32) {
    %c0_i32 = arith.constant 0 : i32
    %c0_i32_0 = arith.constant 0 : i32
    %c0_i32_1 = arith.constant 0 : i32
    return %c0_i32, %c0_i32_0 : i32, i32
  }
  func.func @transform_17(%arg0: i32) -> (i32, i32, i32) {
    %c0_i32 = arith.constant 0 : i32
    %c0_i32_0 = arith.constant 0 : i32
    %c0_i32_1 = arith.constant 0 : i32
    return %arg0, %c0_i32, %c0_i32_0 : i32, i32, i32
  }
}

</mosaic_0001>

<llo_original>
// kernel: tpu_custom_call.1
$region0: #{tpu_custom_call.1}
  #allocation0 [shape = 'u32[]', space=smem, size = 0x4, offset = 0x4, fixed_abs, tag = 'smem constant byte address 0x4 - core index']
  #allocation1 [shape = 'u32[72,128]{1,0:T(1,128)}', space=vmem, size = 0x9000, scoped, tag = 'internal scratch']
  %s0 = inlined_call_operand.vmem [shape: f32[2,16,3], index: 0, kind: input, shape index: {}]
  %s1 = inlined_call_operand.vmem [shape: f32[9,8], index: 1, kind: input, shape index: {}]
  %s2 = inlined_call_operand.vmem [shape: f32[1,8], index: 2, kind: input, shape index: {}]
  %s3 = inlined_call_operand.vmem [shape: f32[24,8], index: 3, kind: input, shape index: {}]
  %s4 = inlined_call_operand.vmem [shape: f32[1,8], index: 4, kind: input, shape index: {}]
  %s5 = inlined_call_operand.vmem [shape: f32[3,8], index: 5, kind: input, shape index: {}]
  %s6 = inlined_call_operand.vmem [shape: f32[1,8], index: 6, kind: input, shape index: {}]
  %s7 = inlined_call_operand.vmem [shape: f32[24,8], index: 7, kind: input, shape index: {}]
  %s8 = inlined_call_operand.vmem [shape: f32[1,8], index: 8, kind: input, shape index: {}]
  %s9 = inlined_call_operand.vmem [shape: f32[24,8], index: 9, kind: input, shape index: {}]
  %s10 = inlined_call_operand.vmem [shape: f32[1,8], index: 10, kind: input, shape index: {}]
  %s11 = inlined_call_operand.vmem [shape: f32[24,8], index: 11, kind: input, shape index: {}]
  %s12 = inlined_call_operand.vmem [shape: f32[1,8], index: 12, kind: input, shape index: {}]
  %s13 = inlined_call_operand.vmem [shape: f32[24,2], index: 13, kind: input, shape index: {}]
  %s14 = inlined_call_operand.vmem [shape: f32[1,2], index: 14, kind: input, shape index: {}]
  %s15 = inlined_call_operand.vmem [shape: f32[8,2], index: 15, kind: input, shape index: {}]
  %s16 = inlined_call_operand.vmem [shape: f32[1,2], index: 16, kind: input, shape index: {}]
  %s17 = inlined_call_operand.vmem [shape: f32[2,16,2], index: 17, kind: output, shape index: {}]
  %s18 = sld [smem:[#allocation0]]
  $region101: #{tpu_custom_call.1} parent=0
    _
  %s20 = ssub.s32 1, %s18
  %s21 = scalar_select 0, %s20, %s18
  loop: start=0, step=1, limit=4
  $region2: #{tpu_custom_call.1} parent=0 // loop_pre_header
    _
  $region3: #{tpu_custom_call.1} parent=0 // loop_header
    %s23 = sphi 0, %s27
    %p24 = scmp.ge.s32.totalorder %s23, 4
    %s33 = sphi 0, %s35
    %s36 = sphi 0, %s33
    %s37 = sphi 0, %s36
    %s53 = sphi 0, %s37
    %s57 = sphi 0, %s57
    %s59 = sphi 0, %s57
    %s60 = sphi 0, %s59
    %s74 = sphi 0, %s60
    %s78 = sphi 0, %s78
    %s80 = sphi 0, %s78
    %s81 = sphi 0, %s80
    %s95 = sphi 0, %s81
    %s99 = sphi 0, %s99
    %s101 = sphi 0, %s99
    %s102 = sphi 0, %s101
    %s116 = sphi 0, %s102
    %s120 = sphi 0, %s120
    %s122 = sphi 0, %s120
    %s123 = sphi 0, %s122
    %s137 = sphi 0, %s123
    %s141 = sphi 0, %s141
    %s143 = sphi 0, %s141
    %s144 = sphi 0, %s143
    %s158 = sphi 0, %s144
    %s162 = sphi 0, %s162
    %s164 = sphi 0, %s162
    %s165 = sphi 0, %s164
    %s179 = sphi 0, %s165
    %s183 = sphi 0, %s183
    %s185 = sphi 0, %s183
    %s186 = sphi 0, %s185
    %s200 = sphi 0, %s186
    %s204 = sphi 0, %s204
    %s206 = sphi 0, %s204
    %s207 = sphi 0, %s206
    %s221 = sphi 0, %s207
    %s225 = sphi 0, %s225
    %s227 = sphi 0, %s225
    %s228 = sphi 0, %s227
    %s242 = sphi 0, %s228
    %s246 = sphi 0, %s246
    %s248 = sphi 0, %s246
    %s249 = sphi 0, %s248
    %s263 = sphi 0, %s249
    %s267 = sphi 0, %s267
    %s269 = sphi 0, %s267
    %s270 = sphi 0, %s269
    %s284 = sphi 0, %s270
    %s288 = sphi 0, %s288
    %s290 = sphi 0, %s288
    %s291 = sphi 0, %s290
    %s305 = sphi 0, %s291
    %s309 = sphi 0, %s309
    %s311 = sphi 0, %s309
    %s312 = sphi 0, %s311
    %s326 = sphi 0, %s312
    %s330 = sphi 0, %s330
    %s332 = sphi 0, %s330
    %s333 = sphi 0, %s332
    %s347 = sphi 0, %s333
    %s351 = sphi 0, %s351
    %s353 = sphi 0, %s351
    %s354 = sphi 0, %s353
    %s368 = sphi 0, %s354
    %s372 = sphi 0, %s372
    %s374 = sphi 0, %s372
    %s375 = sphi 0, %s374
    %s389 = sphi 0, %s375
    %s395 = sphi 0, %s397
    %s398 = sphi 0, %s395
    %s399 = sphi 0, %s398
    %s415 = sphi 0, %s399
  $region4: #{tpu_custom_call.1} parent=0 // loop_header_branch
    %26 = sbr.rel (%p24) target = $region8
  $region5: #{tpu_custom_call.1} parent=0 // loop_body
    %s28 = ssub.s32 %s23, 1
    %s29 = ssub.s32 %s23, 2
    %s30 = sadd.s32 %s23, 1
    %s31 = ssub.s32 %s23, %s30
    %p32 = scmp.eq.s32.totalorder %s31, 0
    %s34 = sadd.s32 %s33, 1
    %s35 = scalar_select %p32, %s33, %s34
    %p38 = pneg %p32
    %p39 = scmp.eq.s32.totalorder %s23, 1
    %p40 = por %p38, %p39
    %p41 = scmp.ne.s32.totalorder %s33, %s36
    %p42 = scmp.eq.s32.totalorder %s23, 0
    %p43 = por %p41, %p42
    %p44 = scmp.ne.s32.totalorder %s33, %s36
    %p45 = scmp.eq.s32.totalorder %s28, 1
    %p46 = por %p44, %p45
    %p47 = scmp.ne.s32.totalorder %s36, %s37
    %p48 = scmp.eq.s32.totalorder %s28, 0
    %p49 = por %p47, %p48
    %p50 = scmp.ne.s32.totalorder %s36, %s37
    %p51 = scmp.eq.s32.totalorder %s29, 1
    %p52 = por %p50, %p51
    %p54 = scmp.ne.s32.totalorder %s37, %s53
    %p55 = scmp.eq.s32.totalorder %s29, 0
    %p56 = por %p54, %p55
    %s58 = sadd.s32 %s57, 1
    %p61 = scmp.eq.s32.totalorder %s23, 1
    %p62 = scmp.ne.s32.totalorder %s57, %s59
    %p63 = scmp.eq.s32.totalorder %s23, 0
    %p64 = por %p62, %p63
    %p65 = scmp.ne.s32.totalorder %s57, %s59
    %p66 = scmp.eq.s32.totalorder %s28, 1
    %p67 = por %p65, %p66
    %p68 = scmp.ne.s32.totalorder %s59, %s60
    %p69 = scmp.eq.s32.totalorder %s28, 0
    %p70 = por %p68, %p69
    %p71 = scmp.ne.s32.totalorder %s59, %s60
    %p72 = scmp.eq.s32.totalorder %s29, 1
    %p73 = por %p71, %p72
    %p75 = scmp.ne.s32.totalorder %s60, %s74
    %p76 = scmp.eq.s32.totalorder %s29, 0
    %p77 = por %p75, %p76
    %s79 = sadd.s32 %s78, 1
    %p82 = scmp.eq.s32.totalorder %s23, 1
    %p83 = scmp.ne.s32.totalorder %s78, %s80
    %p84 = scmp.eq.s32.totalorder %s23, 0
    %p85 = por %p83, %p84
    %p86 = scmp.ne.s32.totalorder %s78, %s80
    %p87 = scmp.eq.s32.totalorder %s28, 1
    %p88 = por %p86, %p87
    %p89 = scmp.ne.s32.totalorder %s80, %s81
    %p90 = scmp.eq.s32.totalorder %s28, 0
    %p91 = por %p89, %p90
    %p92 = scmp.ne.s32.totalorder %s80, %s81
    %p93 = scmp.eq.s32.totalorder %s29, 1
    %p94 = por %p92, %p93
    %p96 = scmp.ne.s32.totalorder %s81, %s95
    %p97 = scmp.eq.s32.totalorder %s29, 0
    %p98 = por %p96, %p97
    %s100 = sadd.s32 %s99, 1
    %p103 = scmp.eq.s32.totalorder %s23, 1
    %p104 = scmp.ne.s32.totalorder %s99, %s101
    %p105 = scmp.eq.s32.totalorder %s23, 0
    %p106 = por %p104, %p105
    %p107 = scmp.ne.s32.totalorder %s99, %s101
    %p108 = scmp.eq.s32.totalorder %s28, 1
    %p109 = por %p107, %p108
    %p110 = scmp.ne.s32.totalorder %s101, %s102
    %p111 = scmp.eq.s32.totalorder %s28, 0
    %p112 = por %p110, %p111
    %p113 = scmp.ne.s32.totalorder %s101, %s102
    %p114 = scmp.eq.s32.totalorder %s29, 1
    %p115 = por %p113, %p114
    %p117 = scmp.ne.s32.totalorder %s102, %s116
    %p118 = scmp.eq.s32.totalorder %s29, 0
    %p119 = por %p117, %p118
    %s121 = sadd.s32 %s120, 1
    %p124 = scmp.eq.s32.totalorder %s23, 1
    %p125 = scmp.ne.s32.totalorder %s120, %s122
    %p126 = scmp.eq.s32.totalorder %s23, 0
    %p127 = por %p125, %p126
    %p128 = scmp.ne.s32.totalorder %s120, %s122
    %p129 = scmp.eq.s32.totalorder %s28, 1
    %p130 = por %p128, %p129
    %p131 = scmp.ne.s32.totalorder %s122, %s123
    %p132 = scmp.eq.s32.totalorder %s28, 0
    %p133 = por %p131, %p132
    %p134 = scmp.ne.s32.totalorder %s122, %s123
    %p135 = scmp.eq.s32.totalorder %s29, 1
    %p136 = por %p134, %p135
    %p138 = scmp.ne.s32.totalorder %s123, %s137
    %p139 = scmp.eq.s32.totalorder %s29, 0
    %p140 = por %p138, %p139
    %s142 = sadd.s32 %s141, 1
    %p145 = scmp.eq.s32.totalorder %s23, 1
    %p146 = scmp.ne.s32.totalorder %s141, %s143
    %p147 = scmp.eq.s32.totalorder %s23, 0
    %p148 = por %p146, %p147
    %p149 = scmp.ne.s32.totalorder %s141, %s143
    %p150 = scmp.eq.s32.totalorder %s28, 1
    %p151 = por %p149, %p150
    %p152 = scmp.ne.s32.totalorder %s143, %s144
    %p153 = scmp.eq.s32.totalorder %s28, 0
    %p154 = por %p152, %p153
    %p155 = scmp.ne.s32.totalorder %s143, %s144
    %p156 = scmp.eq.s32.totalorder %s29, 1
    %p157 = por %p155, %p156
    %p159 = scmp.ne.s32.totalorder %s144, %s158
    %p160 = scmp.eq.s32.totalorder %s29, 0
    %p161 = por %p159, %p160
    %s163 = sadd.s32 %s162, 1
    %p166 = scmp.eq.s32.totalorder %s23, 1
    %p167 = scmp.ne.s32.totalorder %s162, %s164
    %p168 = scmp.eq.s32.totalorder %s23, 0
    %p169 = por %p167, %p168
    %p170 = scmp.ne.s32.totalorder %s162, %s164
    %p171 = scmp.eq.s32.totalorder %s28, 1
    %p172 = por %p170, %p171
    %p173 = scmp.ne.s32.totalorder %s164, %s165
    %p174 = scmp.eq.s32.totalorder %s28, 0
    %p175 = por %p173, %p174
    %p176 = scmp.ne.s32.totalorder %s164, %s165
    %p177 = scmp.eq.s32.totalorder %s29, 1
    %p178 = por %p176, %p177
    %p180 = scmp.ne.s32.totalorder %s165, %s179
    %p181 = scmp.eq.s32.totalorder %s29, 0
    %p182 = por %p180, %p181
    %s184 = sadd.s32 %s183, 1
    %p187 = scmp.eq.s32.totalorder %s23, 1
    %p188 = scmp.ne.s32.totalorder %s183, %s185
    %p189 = scmp.eq.s32.totalorder %s23, 0
    %p190 = por %p188, %p189
    %p191 = scmp.ne.s32.totalorder %s183, %s185
    %p192 = scmp.eq.s32.totalorder %s28, 1
    %p193 = por %p191, %p192
    %p194 = scmp.ne.s32.totalorder %s185, %s186
    %p195 = scmp.eq.s32.totalorder %s28, 0
    %p196 = por %p194, %p195
    %p197 = scmp.ne.s32.totalorder %s185, %s186
    %p198 = scmp.eq.s32.totalorder %s29, 1
    %p199 = por %p197, %p198
    %p201 = scmp.ne.s32.totalorder %s186, %s200
    %p202 = scmp.eq.s32.totalorder %s29, 0
    %p203 = por %p201, %p202
    %s205 = sadd.s32 %s204, 1
    %p208 = scmp.eq.s32.totalorder %s23, 1
    %p209 = scmp.ne.s32.totalorder %s204, %s206
    %p210 = scmp.eq.s32.totalorder %s23, 0
    %p211 = por %p209, %p210
    %p212 = scmp.ne.s32.totalorder %s204, %s206
    %p213 = scmp.eq.s32.totalorder %s28, 1
    %p214 = por %p212, %p213
    %p215 = scmp.ne.s32.totalorder %s206, %s207
    %p216 = scmp.eq.s32.totalorder %s28, 0
    %p217 = por %p215, %p216
    %p218 = scmp.ne.s32.totalorder %s206, %s207
    %p219 = scmp.eq.s32.totalorder %s29, 1
    %p220 = por %p218, %p219
    %p222 = scmp.ne.s32.totalorder %s207, %s221
    %p223 = scmp.eq.s32.totalorder %s29, 0
    %p224 = por %p222, %p223
    %s226 = sadd.s32 %s225, 1
    %p229 = scmp.eq.s32.totalorder %s23, 1
    %p230 = scmp.ne.s32.totalorder %s225, %s227
    %p231 = scmp.eq.s32.totalorder %s23, 0
    %p232 = por %p230, %p231
    %p233 = scmp.ne.s32.totalorder %s225, %s227
    %p234 = scmp.eq.s32.totalorder %s28, 1
    %p235 = por %p233, %p234
    %p236 = scmp.ne.s32.totalorder %s227, %s228
    %p237 = scmp.eq.s32.totalorder %s28, 0
    %p238 = por %p236, %p237
    %p239 = scmp.ne.s32.totalorder %s227, %s228
    %p240 = scmp.eq.s32.totalorder %s29, 1
    %p241 = por %p239, %p240
    %p243 = scmp.ne.s32.totalorder %s228, %s242
    %p244 = scmp.eq.s32.totalorder %s29, 0
    %p245 = por %p243, %p244
    %s247 = sadd.s32 %s246, 1
    %p250 = scmp.eq.s32.totalorder %s23, 1
    %p251 = scmp.ne.s32.totalorder %s246, %s248
    %p252 = scmp.eq.s32.totalorder %s23, 0
    %p253 = por %p251, %p252
    %p254 = scmp.ne.s32.totalorder %s246, %s248
    %p255 = scmp.eq.s32.totalorder %s28, 1
    %p256 = por %p254, %p255
    %p257 = scmp.ne.s32.totalorder %s248, %s249
    %p258 = scmp.eq.s32.totalorder %s28, 0
    %p259 = por %p257, %p258
    %p260 = scmp.ne.s32.totalorder %s248, %s249
    %p261 = scmp.eq.s32.totalorder %s29, 1
    %p262 = por %p260, %p261
    %p264 = scmp.ne.s32.totalorder %s249, %s263
    %p265 = scmp.eq.s32.totalorder %s29, 0
    %p266 = por %p264, %p265
    %s268 = sadd.s32 %s267, 1
    %p271 = scmp.eq.s32.totalorder %s23, 1
    %p272 = scmp.ne.s32.totalorder %s267, %s269
    %p273 = scmp.eq.s32.totalorder %s23, 0
    %p274 = por %p272, %p273
    %p275 = scmp.ne.s32.totalorder %s267, %s269
    %p276 = scmp.eq.s32.totalorder %s28, 1
    %p277 = por %p275, %p276
    %p278 = scmp.ne.s32.totalorder %s269, %s270
    %p279 = scmp.eq.s32.totalorder %s28, 0
    %p280 = por %p278, %p279
    %p281 = scmp.ne.s32.totalorder %s269, %s270
    %p282 = scmp.eq.s32.totalorder %s29, 1
    %p283 = por %p281, %p282
    %p285 = scmp.ne.s32.totalorder %s270, %s284
    %p286 = scmp.eq.s32.totalorder %s29, 0
    %p287 = por %p285, %p286
    %s289 = sadd.s32 %s288, 1
    %p292 = scmp.eq.s32.totalorder %s23, 1
    %p293 = scmp.ne.s32.totalorder %s288, %s290
    %p294 = scmp.eq.s32.totalorder %s23, 0
    %p295 = por %p293, %p294
    %p296 = scmp.ne.s32.totalorder %s288, %s290
    %p297 = scmp.eq.s32.totalorder %s28, 1
    %p298 = por %p296, %p297
    %p299 = scmp.ne.s32.totalorder %s290, %s291
    %p300 = scmp.eq.s32.totalorder %s28, 0
    %p301 = por %p299, %p300
    %p302 = scmp.ne.s32.totalorder %s290, %s291
    %p303 = scmp.eq.s32.totalorder %s29, 1
    %p304 = por %p302, %p303
    %p306 = scmp.ne.s32.totalorder %s291, %s305
    %p307 = scmp.eq.s32.totalorder %s29, 0
    %p308 = por %p306, %p307
    %s310 = sadd.s32 %s309, 1
    %p313 = scmp.eq.s32.totalorder %s23, 1
    %p314 = scmp.ne.s32.totalorder %s309, %s311
    %p315 = scmp.eq.s32.totalorder %s23, 0
    %p316 = por %p314, %p315
    %p317 = scmp.ne.s32.totalorder %s309, %s311
    %p318 = scmp.eq.s32.totalorder %s28, 1
    %p319 = por %p317, %p318
    %p320 = scmp.ne.s32.totalorder %s311, %s312
    %p321 = scmp.eq.s32.totalorder %s28, 0
    %p322 = por %p320, %p321
    %p323 = scmp.ne.s32.totalorder %s311, %s312
    %p324 = scmp.eq.s32.totalorder %s29, 1
    %p325 = por %p323, %p324
    %p327 = scmp.ne.s32.totalorder %s312, %s326
    %p328 = scmp.eq.s32.totalorder %s29, 0
    %p329 = por %p327, %p328
    %s331 = sadd.s32 %s330, 1
    %p334 = scmp.eq.s32.totalorder %s23, 1
    %p335 = scmp.ne.s32.totalorder %s330, %s332
    %p336 = scmp.eq.s32.totalorder %s23, 0
    %p337 = por %p335, %p336
    %p338 = scmp.ne.s32.totalorder %s330, %s332
    %p339 = scmp.eq.s32.totalorder %s28, 1
    %p340 = por %p338, %p339
    %p341 = scmp.ne.s32.totalorder %s332, %s333
    %p342 = scmp.eq.s32.totalorder %s28, 0
    %p343 = por %p341, %p342
    %p344 = scmp.ne.s32.totalorder %s332, %s333
    %p345 = scmp.eq.s32.totalorder %s29, 1
    %p346 = por %p344, %p345
    %p348 = scmp.ne.s32.totalorder %s333, %s347
    %p349 = scmp.eq.s32.totalorder %s29, 0
    %p350 = por %p348, %p349
    %s352 = sadd.s32 %s351, 1
    %p355 = scmp.eq.s32.totalorder %s23, 1
    %p356 = scmp.ne.s32.totalorder %s351, %s353
    %p357 = scmp.eq.s32.totalorder %s23, 0
    %p358 = por %p356, %p357
    %p359 = scmp.ne.s32.totalorder %s351, %s353
    %p360 = scmp.eq.s32.totalorder %s28, 1
    %p361 = por %p359, %p360
    %p362 = scmp.ne.s32.totalorder %s353, %s354
    %p363 = scmp.eq.s32.totalorder %s28, 0
    %p364 = por %p362, %p363
    %p365 = scmp.ne.s32.totalorder %s353, %s354
    %p366 = scmp.eq.s32.totalorder %s29, 1
    %p367 = por %p365, %p366
    %p369 = scmp.ne.s32.totalorder %s354, %s368
    %p370 = scmp.eq.s32.totalorder %s29, 0
    %p371 = por %p369, %p370
    %s373 = sadd.s32 %s372, 1
    %p376 = scmp.eq.s32.totalorder %s23, 1
    %p377 = scmp.ne.s32.totalorder %s372, %s374
    %p378 = scmp.eq.s32.totalorder %s23, 0
    %p379 = por %p377, %p378
    %p380 = scmp.ne.s32.totalorder %s372, %s374
    %p381 = scmp.eq.s32.totalorder %s28, 1
    %p382 = por %p380, %p381
    %p383 = scmp.ne.s32.totalorder %s374, %s375
    %p384 = scmp.eq.s32.totalorder %s28, 0
    %p385 = por %p383, %p384
    %p386 = scmp.ne.s32.totalorder %s374, %s375
    %p387 = scmp.eq.s32.totalorder %s29, 1
    %p388 = por %p386, %p387
    %p390 = scmp.ne.s32.totalorder %s375, %s389
    %p391 = scmp.eq.s32.totalorder %s29, 0
    %p392 = por %p390, %p391
    %s393 = ssub.s32 %s23, %s30
    %p394 = scmp.eq.s32.totalorder %s393, 0
    %s396 = sadd.s32 %s395, 1
    %s397 = scalar_select %p394, %s395, %s396
    %p400 = pneg %p394
    %p401 = scmp.eq.s32.totalorder %s23, 1
    %p402 = por %p400, %p401
    %p403 = scmp.ne.s32.totalorder %s395, %s398
    %p404 = scmp.eq.s32.totalorder %s23, 0
    %p405 = por %p403, %p404
    %p406 = scmp.ne.s32.totalorder %s395, %s398
    %p407 = scmp.eq.s32.totalorder %s28, 1
    %p408 = por %p406, %p407
    %p409 = scmp.ne.s32.totalorder %s398, %s399
    %p410 = scmp.eq.s32.totalorder %s28, 0
    %p411 = por %p409, %p410
    %p412 = scmp.ne.s32.totalorder %s398, %s399
    %p413 = scmp.eq.s32.totalorder %s29, 1
    %p414 = por %p412, %p413
    %p416 = scmp.ne.s32.totalorder %s399, %s415
    %p417 = scmp.eq.s32.totalorder %s29, 0
    %p418 = por %p416, %p417
    %p419 = scmp.le.s32.totalorder 1, %s23
    %p420 = scmp.lt.s32.totalorder %s23, 3
    %p421 = pnand %p419, %p420
    %p422 = pneg %p421
    // Predicated region
    $region9: #{tpu_custom_call.1} parent=5 // pred_check
      _
    $region10: #{tpu_custom_call.1} parent=5 // pred_check_branch
      %424 = sbr.rel (%p421) target = $region12
    $region11: #{tpu_custom_call.1} parent=5 // pred_region
      %s425 = ssub.s32 %s23, 1
      // Predicated region
      $region13: #{tpu_custom_call.1} parent=11 // pred_check
        %p426 = pneg %p70
      $region14: #{tpu_custom_call.1} parent=11 // pred_check_branch
        %428 = sbr.rel (%p426) target = $region16
      $region15: #{tpu_custom_call.1} parent=11 // pred_region
        _
      $region16: #{tpu_custom_call.1} parent=11 // pred_fallthru
        _
      // Predicated region
      $region17: #{tpu_custom_call.1} parent=11 // pred_check
        %p429 = pneg %p91
      $region18: #{tpu_custom_call.1} parent=11 // pred_check_branch
        %431 = sbr.rel (%p429) target = $region20
      $region19: #{tpu_custom_call.1} parent=11 // pred_region
        _
      $region20: #{tpu_custom_call.1} parent=11 // pred_fallthru
        _
      // Predicated region
      $region21: #{tpu_custom_call.1} parent=11 // pred_check
        %p432 = pneg %p112
      $region22: #{tpu_custom_call.1} parent=11 // pred_check_branch
        %434 = sbr.rel (%p432) target = $region24
      $region23: #{tpu_custom_call.1} parent=11 // pred_region
        _
      $region24: #{tpu_custom_call.1} parent=11 // pred_fallthru
        _
      // Predicated region
      $region25: #{tpu_custom_call.1} parent=11 // pred_check
        %p435 = pneg %p133
      $region26: #{tpu_custom_call.1} parent=11 // pred_check_branch
        %437 = sbr.rel (%p435) target = $region28
      $region27: #{tpu_custom_call.1} parent=11 // pred_region
        _
      $region28: #{tpu_custom_call.1} parent=11 // pred_fallthru
        _
      // Predicated region
      $region29: #{tpu_custom_call.1} parent=11 // pred_check
        %p438 = pneg %p154
      $region30: #{tpu_custom_call.1} parent=11 // pred_check_branch
        %440 = sbr.rel (%p438) target = $region32
      $region31: #{tpu_custom_call.1} parent=11 // pred_region
        _
      $region32: #{tpu_custom_call.1} parent=11 // pred_fallthru
        _
      // Predicated region
      $region33: #{tpu_custom_call.1} parent=11 // pred_check
        %p441 = pneg %p175
      $region34: #{tpu_custom_call.1} parent=11 // pred_check_branch
        %443 = sbr.rel (%p441) target = $region36
      $region35: #{tpu_custom_call.1} parent=11 // pred_region
        _
      $region36: #{tpu_custom_call.1} parent=11 // pred_fallthru
        _
      // Predicated region
      $region37: #{tpu_custom_call.1} parent=11 // pred_check
        %p444 = pneg %p196
      $region38: #{tpu_custom_call.1} parent=11 // pred_check_branch
        %446 = sbr.rel (%p444) target = $region40
      $region39: #{tpu_custom_call.1} parent=11 // pred_region
        _
      $region40: #{tpu_custom_call.1} parent=11 // pred_fallthru
        _
      // Predicated region
      $region41: #{tpu_custom_call.1} parent=11 // pred_check
        %p447 = pneg %p217
      $region42: #{tpu_custom_call.1} parent=11 // pred_check_branch
        %449 = sbr.rel (%p447) target = $region44
      $region43: #{tpu_custom_call.1} parent=11 // pred_region
        _
      $region44: #{tpu_custom_call.1} parent=11 // pred_fallthru
        _
      // Predicated region
      $region45: #{tpu_custom_call.1} parent=11 // pred_check
        %p450 = pneg %p238
      $region46: #{tpu_custom_call.1} parent=11 // pred_check_branch
        %452 = sbr.rel (%p450) target = $region48
      $region47: #{tpu_custom_call.1} parent=11 // pred_region
        _
      $region48: #{tpu_custom_call.1} parent=11 // pred_fallthru
        _
      // Predicated region
      $region49: #{tpu_custom_call.1} parent=11 // pred_check
        %p453 = pneg %p259
      $region50: #{tpu_custom_call.1} parent=11 // pred_check_branch
        %455 = sbr.rel (%p453) target = $region52
      $region51: #{tpu_custom_call.1} parent=11 // pred_region
        _
      $region52: #{tpu_custom_call.1} parent=11 // pred_fallthru
        _
      // Predicated region
      $region53: #{tpu_custom_call.1} parent=11 // pred_check
        %p456 = pneg %p280
      $region54: #{tpu_custom_call.1} parent=11 // pred_check_branch
        %458 = sbr.rel (%p456) target = $region56
      $region55: #{tpu_custom_call.1} parent=11 // pred_region
        _
      $region56: #{tpu_custom_call.1} parent=11 // pred_fallthru
        _
      // Predicated region
      $region57: #{tpu_custom_call.1} parent=11 // pred_check
        %p459 = pneg %p301
      $region58: #{tpu_custom_call.1} parent=11 // pred_check_branch
        %461 = sbr.rel (%p459) target = $region60
      $region59: #{tpu_custom_call.1} parent=11 // pred_region
        _
      $region60: #{tpu_custom_call.1} parent=11 // pred_fallthru
        _
      // Predicated region
      $region61: #{tpu_custom_call.1} parent=11 // pred_check
        %p462 = pneg %p322
      $region62: #{tpu_custom_call.1} parent=11 // pred_check_branch
        %464 = sbr.rel (%p462) target = $region64
      $region63: #{tpu_custom_call.1} parent=11 // pred_region
        _
      $region64: #{tpu_custom_call.1} parent=11 // pred_fallthru
        _
      // Predicated region
      $region65: #{tpu_custom_call.1} parent=11 // pred_check
        %p465 = pneg %p343
      $region66: #{tpu_custom_call.1} parent=11 // pred_check_branch
        %467 = sbr.rel (%p465) target = $region68
      $region67: #{tpu_custom_call.1} parent=11 // pred_region
        _
      $region68: #{tpu_custom_call.1} parent=11 // pred_fallthru
        _
      // Predicated region
      $region69: #{tpu_custom_call.1} parent=11 // pred_check
        %p468 = pneg %p364
      $region70: #{tpu_custom_call.1} parent=11 // pred_check_branch
        %470 = sbr.rel (%p468) target = $region72
      $region71: #{tpu_custom_call.1} parent=11 // pred_region
        _
      $region72: #{tpu_custom_call.1} parent=11 // pred_fallthru
        _
      // Predicated region
      $region73: #{tpu_custom_call.1} parent=11 // pred_check
        %p471 = pneg %p385
      $region74: #{tpu_custom_call.1} parent=11 // pred_check_branch
        %473 = sbr.rel (%p471) target = $region76
      $region75: #{tpu_custom_call.1} parent=11 // pred_region
        _
      $region76: #{tpu_custom_call.1} parent=11 // pred_fallthru
        _
    $region12: #{tpu_custom_call.1} parent=5 // pred_fallthru
      _
    %p474 = scmp.lt.s32.totalorder %s23, 2
    // Predicated region
    $region77: #{tpu_custom_call.1} parent=5 // pred_check
      %p475 = pneg %p474
    $region78: #{tpu_custom_call.1} parent=5 // pred_check_branch
      %477 = sbr.rel (%p475) target = $region80
    $region79: #{tpu_custom_call.1} parent=5 // pred_region
      // Predicated region
      $region81: #{tpu_custom_call.1} parent=79 // pred_check
        %p478 = pneg %p43
      $region82: #{tpu_custom_call.1} parent=79 // pred_check_branch
        %480 = sbr.rel (%p478) target = $region84
      $region83: #{tpu_custom_call.1} parent=79 // pred_region
        %p481 = scmp.lt.s32.totalorder %s23, 1
        %s482 = scalar_select %p481, %s23, 1
        %s483 = smul.addr %s482, 2
        %s484 = smul.addr %s483, 8
        %s485 = scalar_lea.vmem %s0, %s484
      $region84: #{tpu_custom_call.1} parent=79 // pred_fallthru
        _
    $region80: #{tpu_custom_call.1} parent=5 // pred_fallthru
      _
    %p486 = scmp.le.s32.totalorder 1, %s23
    %p487 = scmp.lt.s32.totalorder %s23, 3
    %p488 = pnand %p486, %p487
    %p489 = pneg %p488
    // Predicated region
    $region85: #{tpu_custom_call.1} parent=5 // pred_check
      _
    $region86: #{tpu_custom_call.1} parent=5 // pred_check_branch
      %491 = sbr.rel (%p488) target = $region88
    $region87: #{tpu_custom_call.1} parent=5 // pred_region
      %s492 = ssub.s32 %s23, 1
      %p493 = scmp.lt.s32.totalorder %s28, 1
      %s494 = scalar_select %p493, %s28, 1
      %s495 = smul.addr %s494, 2
      %s496 = smul.addr %s495, 8
      %s497 = scalar_lea.vmem %s0, %s496
      %p498 = pneg %p49
      %p499 = pneg %p46
      %p500 = pneg %p70
      %p501 = pneg %p67
      %p502 = pneg %p91
      %p503 = pneg %p88
      %p504 = pneg %p112
      %p505 = pneg %p109
      %p506 = pneg %p133
      %p507 = pneg %p130
      %p508 = pneg %p154
      %p509 = pneg %p151
      %p510 = pneg %p175
      %p511 = pneg %p172
      %p512 = pneg %p196
      %p513 = pneg %p193
      %p514 = pneg %p217
      %p515 = pneg %p214
      %p516 = pneg %p238
      %p517 = pneg %p235
      %p518 = pneg %p259
      %p519 = pneg %p256
      %p520 = pneg %p280
      %p521 = pneg %p277
      %p522 = pneg %p301
      %p523 = pneg %p298
      %p524 = pneg %p322
      %p525 = pneg %p319
      %p526 = pneg %p343
      %p527 = pneg %p340
      %p528 = pneg %p364
      %p529 = pneg %p361
      %p530 = pneg %p385
      %p531 = pneg %p382
      %p532 = pneg %p411
      %p533 = pneg %p408
      %p534 = scmp.lt.s32.totalorder %s28, 1
      %s535 = scalar_select %p534, %s28, 1
      %s536 = smul.addr %s535, 2
      %s537 = smul.addr %s536, 8
      %s538 = scalar_lea.vmem %s17, %s537
      %p539 = scmp.lt.s32.totalorder %s28, 1
      %s540 = scalar_select %p539, %s28, 1
      %s541 = smul.addr %s540, 2
      %s542 = smul.addr %s541, 8
      %s543 = scalar_lea.vmem %s0, %s542
      %p544 = scmp.lt.s32.totalorder %s28, 1
      %s545 = scalar_select %p544, %s28, 1
      %s546 = smul.addr %s545, 2
      %s547 = smul.addr %s546, 8
      %s548 = scalar_lea.vmem %s17, %s547
      %v549 = vld [vmem:[%s543] sm:$0xff]
      %v550 = vld [vmem:[%s543 + $0x8] sm:$0xff]
      %v551 = vld [vmem:[%s1] sm:$0xff]
      %v552 = vld [vmem:[%s1 + $0x8] sm:$0x1]
      %v553 = vld [vmem:[%s2] sm:$0x1]
      %v554 = vld [vmem:[%s3] sm:$0xff]
      %v555 = vld [vmem:[%s3 + $0x8] sm:$0xff]
      %v556 = vld [vmem:[%s3 + $0x10] sm:$0xff]
      %v557 = vld [vmem:[%s4] sm:$0x1]
      %vm560 = vcmask 1041408
      %v561 = vrot.slane %v549, 6
      %v562 = vrot.slane %v550, 6
      %v563 = vsel %vm560, %v561, %v562
      %v566 = vsel %vm560, 0.0, %v561
      %vm568 = vcmask 1046528
      %v569 = vrot.slane %v566, 1
      %v570 = vrot.slane %v563, 1
      %v571 = vsel %vm568, %v569, %v570
      %v572 = vrot.slane %v562, 1
      %v573 = vsel %vm568, %v570, %v572
      %574 = vrot.lane.b32.xlu0 %v571, 3
      %v575 = vpop.permute.xlu0 %574
      %576 = vrot.lane.b32.xlu0 %v573, 3
      %v577 = vpop.permute.xlu0 %576
      %vm580 = vcmask 1045504
      %v581 = vrot.slane %v566, 2
      %v582 = vrot.slane %v563, 2
      %v583 = vsel %vm580, %v581, %v582
      %v584 = vrot.slane %v562, 2
      %v585 = vsel %vm580, %v582, %v584
      %586 = vrot.lane.b32.xlu0 %v583, 6
      %v587 = vpop.permute.xlu0 %586
      %588 = vrot.lane.b32.xlu0 %v585, 6
      %v589 = vpop.permute.xlu0 %588
      %vm592 = vcmask 23552
      %v593 = vsel %vm592, %v566, %v575
      %v594 = vsel %vm592, %v563, %v577
      %vm595 = vcmask 48128
      %v596 = vsel %vm595, %v593, %v587
      %v597 = vsel %vm595, %v594, %v589
      %v599 = vperm.slane %v553, 0
      %vm601 = vcmask 72704
      %v603 = vsel %vm601, %v596, 0
      %v606 = vsel %vm601, %v597, 0
      %vm608 = vcmask 1040384
      %v610 = vsel %vm608, %v552, 0
      %612 = vmatpush.msra.mxu0 0.0
      %613 = vmatpush.msra.mxu0 0.0
      %614 = vmatpush.msra.mxu0 0.0
      %615 = vmatpush.msra.mxu0 0.0
      %616 = vmatpush.msra.mxu0 0.0
      %617 = vmatpush.msra.mxu0 0.0
      %618 = vmatpush.msra.mxu0 0.0
      %619 = vmatpush.msra.mxu0 0.0
      %620 = vmatpush.msra.mxu0 0.0
      %621 = vmatpush.msra.mxu0 0.0
      %622 = vmatpush.msra.mxu0 0.0
      %623 = vmatpush.msra.mxu0 0.0
      %624 = vmatpush.msra.mxu0 0.0
      %625 = vmatpush.msra.mxu0 0.0
      %626 = vmatpush.msra.mxu0 %v610
      %627 = vmatpush.msra.mxu0 %v551
      %628 = vmatmul.f32.gmra.mxu0 %v603
      %v629 = vpop.f32.mrf.mxu0
      %v630 = vadd.f32 %v599, %v629
      %631 = vmatmul.f32.gmra.mxu0 %v606
      %v632 = vpop.f32.mrf.mxu0
      %v633 = vadd.f32 %v599, %v632
      %634 = vdwg.mxu0
      %v635 = vmax.f32 %v630, 0.0
      %v636 = vmax.f32 %v633, 0.0
      %v639 = vrot.slane %v635, 6
      %v640 = vrot.slane %v636, 6
      %v641 = vsel %vm560, %v639, %v640
      %v644 = vsel %vm560, 0.0, %v639
      %v646 = vrot.slane %v644, 1
      %v647 = vrot.slane %v641, 1
      %v648 = vsel %vm568, %v646, %v647
      %v649 = vrot.slane %v640, 1
      %v650 = vsel %vm568, %v647, %v649
      %651 = vrot.lane.b32.xlu0 %v648, 8
      %v652 = vpop.permute.xlu0 %651
      %653 = vrot.lane.b32.xlu0 %v650, 8
      %v654 = vpop.permute.xlu0 %653
      %v657 = vrot.slane %v644, 2
      %v658 = vrot.slane %v641, 2
      %v659 = vsel %vm580, %v657, %v658
      %v660 = vrot.slane %v640, 2
      %v661 = vsel %vm580, %v658, %v660
      %662 = vrot.lane.b32.xlu0 %v659, 16
      %v663 = vpop.permute.xlu0 %662
      %664 = vrot.lane.b32.xlu0 %v661, 16
      %v665 = vpop.permute.xlu0 %664
      %vm668 = vcmask 64512
      %v669 = vsel %vm668, %v644, %v652
      %v670 = vsel %vm668, %v641, %v654
      %vm671 = vcmask 130048
      %v672 = vsel %vm671, %v669, %v663
      %v673 = vsel %vm671, %v670, %v665
      %v675 = vperm.slane %v557, 0
      %vm677 = vcmask 195584
      %v679 = vsel %vm677, %v672, 0
      %v682 = vsel %vm677, %v673, 0
      %684 = vmatpush.msra.mxu0 0.0
      %685 = vmatpush.msra.mxu0 0.0
      %686 = vmatpush.msra.mxu0 0.0
      %687 = vmatpush.msra.mxu0 0.0
      %688 = vmatpush.msra.mxu0 0.0
      %689 = vmatpush.msra.mxu0 0.0
      %690 = vmatpush.msra.mxu0 0.0
      %691 = vmatpush.msra.mxu0 0.0
      %692 = vmatpush.msra.mxu0 0.0
      %693 = vmatpush.msra.mxu0 0.0
      %694 = vmatpush.msra.mxu0 0.0
      %695 = vmatpush.msra.mxu0 0.0
      %696 = vmatpush.msra.mxu0 0.0
      %697 = vmatpush.msra.mxu0 %v556
      %698 = vmatpush.msra.mxu0 %v555
      %699 = vmatpush.msra.mxu0 %v554
      %700 = vmatmul.f32.gmra.mxu0 %v679
      %v701 = vpop.f32.mrf.mxu0
      %v702 = vadd.f32 %v675, %v701
      %703 = vmatmul.f32.gmra.mxu0 %v682
      %v704 = vpop.f32.mrf.mxu0
      %v705 = vadd.f32 %v675, %v704
      %706 = vdwg.mxu0
      %v707 = vmax.f32 %v702, 0.0
      %v708 = vmax.f32 %v705, 0.0
      %v709 = vld [vmem:[%s5] sm:$0x7]
      %v710 = vld [vmem:[%s6] sm:$0x1]
      %v712 = vperm.slane %v710, 0
      %v714 = vsel %vm592, %v549, 0
      %v716 = vsel %vm592, %v550, 0
      %vm718 = vcmask 1042432
      %v720 = vsel %vm718, %v709, 0
      %722 = vmatpush.msra.mxu0 0.0
      %723 = vmatpush.msra.mxu0 0.0
      %724 = vmatpush.msra.mxu0 0.0
      %725 = vmatpush.msra.mxu0 0.0
      %726 = vmatpush.msra.mxu0 0.0
      %727 = vmatpush.msra.mxu0 0.0
      %728 = vmatpush.msra.mxu0 0.0
      %729 = vmatpush.msra.mxu0 0.0
      %730 = vmatpush.msra.mxu0 0.0
      %731 = vmatpush.msra.mxu0 0.0
      %732 = vmatpush.msra.mxu0 0.0
      %733 = vmatpush.msra.mxu0 0.0
      %734 = vmatpush.msra.mxu0 0.0
      %735 = vmatpush.msra.mxu0 0.0
      %736 = vmatpush.msra.mxu0 0.0
      %737 = vmatpush.msra.mxu0 %v720
      %738 = vmatmul.f32.gmra.mxu0 %v714
      %v739 = vpop.f32.mrf.mxu0
      %v740 = vadd.f32 %v712, %v739
      %741 = vmatmul.f32.gmra.mxu0 %v716
      %v742 = vpop.f32.mrf.mxu0
      %v743 = vadd.f32 %v712, %v742
      %744 = vdwg.mxu0
      %v745 = vadd.f32 %v707, %v740
      %v746 = vadd.f32 %v708, %v743
      %v747 = vld [vmem:[%s7] sm:$0xff]
      %v748 = vld [vmem:[%s7 + $0x8] sm:$0xff]
      %v749 = vld [vmem:[%s7 + $0x10] sm:$0xff]
      %v750 = vld [vmem:[%s8] sm:$0x1]
      %v751 = vld [vmem:[%s9] sm:$0xff]
      %v752 = vld [vmem:[%s9 + $0x8] sm:$0xff]
      %v753 = vld [vmem:[%s9 + $0x10] sm:$0xff]
      %v754 = vld [vmem:[%s10] sm:$0x1]
      %vm757 = vcmask 1043456
      %v758 = vrot.slane %v745, 4
      %v759 = vrot.slane %v746, 4
      %v760 = vsel %vm757, %v758, %v759
      %v763 = vsel %vm757, 0.0, %v758
      %v765 = vrot.slane %v763, 2
      %v766 = vrot.slane %v760, 2
      %v767 = vsel %vm580, %v765, %v766
      %v768 = vrot.slane %v759, 2
      %v769 = vsel %vm580, %v766, %v768
      %770 = vrot.lane.b32.xlu0 %v767, 8
      %v771 = vpop.permute.xlu0 %770
      %772 = vrot.lane.b32.xlu0 %v769, 8
      %v773 = vpop.permute.xlu0 %772
      %v776 = vrot.slane %v763, 4
      %v777 = vrot.slane %v760, 4
      %v778 = vsel %vm757, %v776, %v777
      %v779 = vrot.slane %v759, 4
      %v780 = vsel %vm757, %v777, %v779
      %781 = vrot.lane.b32.xlu0 %v778, 16
      %v782 = vpop.permute.xlu0 %781
      %783 = vrot.lane.b32.xlu0 %v780, 16
      %v784 = vpop.permute.xlu0 %783
      %v787 = vsel %vm668, %v763, %v771
      %v788 = vsel %vm668, %v760, %v773
      %v789 = vsel %vm671, %v787, %v782
      %v790 = vsel %vm671, %v788, %v784
      %v792 = vperm.slane %v750, 0
      %v795 = vsel %vm677, %v789, 0
      %v798 = vsel %vm677, %v790, 0
      %800 = vmatpush.msra.mxu0 0.0
      %801 = vmatpush.msra.mxu0 0.0
      %802 = vmatpush.msra.mxu0 0.0
      %803 = vmatpush.msra.mxu0 0.0
      %804 = vmatpush.msra.mxu0 0.0
      %805 = vmatpush.msra.mxu0 0.0
      %806 = vmatpush.msra.mxu0 0.0
      %807 = vmatpush.msra.mxu0 0.0
      %808 = vmatpush.msra.mxu0 0.0
      %809 = vmatpush.msra.mxu0 0.0
      %810 = vmatpush.msra.mxu0 0.0
      %811 = vmatpush.msra.mxu0 0.0
      %812 = vmatpush.msra.mxu0 0.0
      %813 = vmatpush.msra.mxu0 %v749
      %814 = vmatpush.msra.mxu0 %v748
      %815 = vmatpush.msra.mxu0 %v747
      %816 = vmatmul.f32.gmra.mxu0 %v795
      %v817 = vpop.f32.mrf.mxu0
      %v818 = vadd.f32 %v792, %v817
      %819 = vmatmul.f32.gmra.mxu0 %v798
      %v820 = vpop.f32.mrf.mxu0
      %v821 = vadd.f32 %v792, %v820
      %822 = vdwg.mxu0
      %v823 = vmax.f32 %v818, 0.0
      %v824 = vmax.f32 %v821, 0.0
      %v827 = vrot.slane %v823, 4
      %v828 = vrot.slane %v824, 4
      %v829 = vsel %vm757, %v827, %v828
      %v832 = vsel %vm757, 0.0, %v827
      %v834 = vrot.slane %v832, 2
      %v835 = vrot.slane %v829, 2
      %v836 = vsel %vm580, %v834, %v835
      %v837 = vrot.slane %v828, 2
      %v838 = vsel %vm580, %v835, %v837
      %839 = vrot.lane.b32.xlu0 %v836, 8
      %v840 = vpop.permute.xlu0 %839
      %841 = vrot.lane.b32.xlu0 %v838, 8
      %v842 = vpop.permute.xlu0 %841
      %v845 = vrot.slane %v832, 4
      %v846 = vrot.slane %v829, 4
      %v847 = vsel %vm757, %v845, %v846
      %v848 = vrot.slane %v828, 4
      %v849 = vsel %vm757, %v846, %v848
      %850 = vrot.lane.b32.xlu0 %v847, 16
      %v851 = vpop.permute.xlu0 %850
      %852 = vrot.lane.b32.xlu0 %v849, 16
      %v853 = vpop.permute.xlu0 %852
      %v856 = vsel %vm668, %v832, %v840
      %v857 = vsel %vm668, %v829, %v842
      %v858 = vsel %vm671, %v856, %v851
      %v859 = vsel %vm671, %v857, %v853
      %v861 = vperm.slane %v754, 0
      %v864 = vsel %vm677, %v858, 0
      %v867 = vsel %vm677, %v859, 0
      %869 = vmatpush.msra.mxu0 0.0
      %870 = vmatpush.msra.mxu0 0.0
      %871 = vmatpush.msra.mxu0 0.0
      %872 = vmatpush.msra.mxu0 0.0
      %873 = vmatpush.msra.mxu0 0.0
      %874 = vmatpush.msra.mxu0 0.0
      %875 = vmatpush.msra.mxu0 0.0
      %876 = vmatpush.msra.mxu0 0.0
      %877 = vmatpush.msra.mxu0 0.0
      %878 = vmatpush.msra.mxu0 0.0
      %879 = vmatpush.msra.mxu0 0.0
      %880 = vmatpush.msra.mxu0 0.0
      %881 = vmatpush.msra.mxu0 0.0
      %882 = vmatpush.msra.mxu0 %v753
      %883 = vmatpush.msra.mxu0 %v752
      %884 = vmatpush.msra.mxu0 %v751
      %885 = vmatmul.f32.gmra.mxu0 %v864
      %v886 = vpop.f32.mrf.mxu0
      %v887 = vadd.f32 %v861, %v886
      %888 = vmatmul.f32.gmra.mxu0 %v867
      %v889 = vpop.f32.mrf.mxu0
      %v890 = vadd.f32 %v861, %v889
      %891 = vdwg.mxu0
      %v892 = vmax.f32 %v887, 0.0
      %v893 = vmax.f32 %v890, 0.0
      %v894 = vadd.f32 %v892, %v745
      %v895 = vadd.f32 %v893, %v746
      %v896 = vld [vmem:[%s11] sm:$0xff]
      %v897 = vld [vmem:[%s11 + $0x8] sm:$0xff]
      %v898 = vld [vmem:[%s11 + $0x10] sm:$0xff]
      %v899 = vld [vmem:[%s12] sm:$0x1]
      %v900 = vld [vmem:[%s13] sm:$0xff]
      %v901 = vld [vmem:[%s13 + $0x8] sm:$0xff]
      %v902 = vld [vmem:[%s13 + $0x10] sm:$0xff]
      %v903 = vld [vmem:[%s14] sm:$0x1]
      %v907 = vrot.slane 0.0, 4
      %v908 = vrot.slane %v894, 4
      %v909 = vsel %vm757, %v907, %v908
      %v910 = vrot.slane %v895, 4
      %v911 = vsel %vm757, %v908, %v910
      %912 = vrot.lane.b32.xlu0 %v909, 8
      %v913 = vpop.permute.xlu0 %912
      %914 = vrot.lane.b32.xlu0 %v911, 8
      %v915 = vpop.permute.xlu0 %914
      %918 = vrot.lane.b32.xlu0 %v894, 16
      %v919 = vpop.permute.xlu0 %918
      %920 = vrot.lane.b32.xlu0 %v895, 16
      %v921 = vpop.permute.xlu0 %920
      %v924 = vsel %vm668, 0.0, %v913
      %v925 = vsel %vm668, %v894, %v915
      %v926 = vsel %vm671, %v924, %v919
      %v927 = vsel %vm671, %v925, %v921
      %v929 = vperm.slane %v899, 0
      %v932 = vsel %vm677, %v926, 0
      %v935 = vsel %vm677, %v927, 0
      %937 = vmatpush.msra.mxu0 0.0
      %938 = vmatpush.msra.mxu0 0.0
      %939 = vmatpush.msra.mxu0 0.0
      %940 = vmatpush.msra.mxu0 0.0
      %941 = vmatpush.msra.mxu0 0.0
      %942 = vmatpush.msra.mxu0 0.0
      %943 = vmatpush.msra.mxu0 0.0
      %944 = vmatpush.msra.mxu0 0.0
      %945 = vmatpush.msra.mxu0 0.0
      %946 = vmatpush.msra.mxu0 0.0
      %947 = vmatpush.msra.mxu0 0.0
      %948 = vmatpush.msra.mxu0 0.0
      %949 = vmatpush.msra.mxu0 0.0
      %950 = vmatpush.msra.mxu0 %v898
      %951 = vmatpush.msra.mxu0 %v897
      %952 = vmatpush.msra.mxu0 %v896
      %953 = vmatmul.f32.gmra.mxu0 %v932
      %v954 = vpop.f32.mrf.mxu0
      %v955 = vadd.f32 %v929, %v954
      %956 = vmatmul.f32.gmra.mxu0 %v935
      %v957 = vpop.f32.mrf.mxu0
      %v958 = vadd.f32 %v929, %v957
      %959 = vdwg.mxu0
      %v960 = vmax.f32 %v955, 0.0
      %v961 = vmax.f32 %v958, 0.0
      %v964 = vrot.slane %v960, 4
      %v965 = vsel %vm757, %v907, %v964
      %v966 = vrot.slane %v961, 4
      %v967 = vsel %vm757, %v964, %v966
      %968 = vrot.lane.b32.xlu0 %v965, 8
      %v969 = vpop.permute.xlu0 %968
      %970 = vrot.lane.b32.xlu0 %v967, 8
      %v971 = vpop.permute.xlu0 %970
      %974 = vrot.lane.b32.xlu0 %v960, 16
      %v975 = vpop.permute.xlu0 %974
      %976 = vrot.lane.b32.xlu0 %v961, 16
      %v977 = vpop.permute.xlu0 %976
      %v980 = vsel %vm668, 0.0, %v969
      %v981 = vsel %vm668, %v960, %v971
      %v982 = vsel %vm671, %v980, %v975
      %v983 = vsel %vm671, %v981, %v977
      %v985 = vperm.slane %v903, 0
      %v988 = vsel %vm677, %v982, 0
      %v991 = vsel %vm677, %v983, 0
      %993 = vmatpush.msra.mxu0 0.0
      %994 = vmatpush.msra.mxu0 0.0
      %995 = vmatpush.msra.mxu0 0.0
      %996 = vmatpush.msra.mxu0 0.0
      %997 = vmatpush.msra.mxu0 0.0
      %998 = vmatpush.msra.mxu0 0.0
      %999 = vmatpush.msra.mxu0 0.0
      %1000 = vmatpush.msra.mxu0 0.0
      %1001 = vmatpush.msra.mxu0 0.0
      %1002 = vmatpush.msra.mxu0 0.0
      %1003 = vmatpush.msra.mxu0 0.0
      %1004 = vmatpush.msra.mxu0 0.0
      %1005 = vmatpush.msra.mxu0 0.0
      %1006 = vmatpush.msra.mxu0 %v902
      %1007 = vmatpush.msra.mxu0 %v901
      %1008 = vmatpush.msra.mxu0 %v900
      %1009 = vmatmul.f32.gmra.mxu0 %v988
      %v1010 = vpop.f32.mrf.mxu0
      %v1011 = vadd.f32 %v985, %v1010
      %1012 = vmatmul.f32.gmra.mxu0 %v991
      %v1013 = vpop.f32.mrf.mxu0
      %v1014 = vadd.f32 %v985, %v1013
      %1015 = vdwg.mxu0
      %v1016 = vld [vmem:[%s15] sm:$0xff]
      %v1017 = vld [vmem:[%s16] sm:$0x1]
      %v1019 = vperm.slane %v1017, 0
      %v1021 = vsel %vm668, %v894, 0
      %v1023 = vsel %vm668, %v895, 0
      %1025 = vmatpush.msra.mxu0 0.0
      %1026 = vmatpush.msra.mxu0 0.0
      %1027 = vmatpush.msra.mxu0 0.0
      %1028 = vmatpush.msra.mxu0 0.0
      %1029 = vmatpush.msra.mxu0 0.0
      %1030 = vmatpush.msra.mxu0 0.0
      %1031 = vmatpush.msra.mxu0 0.0
      %1032 = vmatpush.msra.mxu0 0.0
      %1033 = vmatpush.msra.mxu0 0.0
      %1034 = vmatpush.msra.mxu0 0.0
      %1035 = vmatpush.msra.mxu0 0.0
      %1036 = vmatpush.msra.mxu0 0.0
      %1037 = vmatpush.msra.mxu0 0.0
      %1038 = vmatpush.msra.mxu0 0.0
      %1039 = vmatpush.msra.mxu0 0.0
      %1040 = vmatpush.msra.mxu0 %v1016
      %1041 = vmatmul.f32.gmra.mxu0 %v1021
      %v1042 = vpop.f32.mrf.mxu0
      %v1043 = vadd.f32 %v1019, %v1042
      %1044 = vmatmul.f32.gmra.mxu0 %v1023
      %v1045 = vpop.f32.mrf.mxu0
      %v1046 = vadd.f32 %v1019, %v1045
      %1047 = vdwg.mxu0
      %v1048 = vadd.f32 %v1011, %v1043
      %v1049 = vadd.f32 %v1014, %v1046
      %vm1050 = vcmask 15360
      %1051 = vst.msk [vmem:[%s548] sm:$0xff] %vm1050, %v1048
      %1052 = vst.msk [vmem:[%s548 + $0x8] sm:$0xff] %vm1050, %v1049
      %p1053 = scmp.lt.s32.totalorder %s28, 1
      %s1054 = scalar_select %p1053, %s28, 1
      %s1055 = smul.addr %s1054, 2
      %s1056 = smul.addr %s1055, 8
      %s1057 = scalar_lea.vmem %s17, %s1056
      // Predicated region
      $region89: #{tpu_custom_call.1} parent=87 // pred_check
        %p1058 = pneg %p408
      $region90: #{tpu_custom_call.1} parent=87 // pred_check_branch
        %1060 = sbr.rel (%p1058) target = $region92
      $region91: #{tpu_custom_call.1} parent=87 // pred_region
        _
      $region92: #{tpu_custom_call.1} parent=87 // pred_fallthru
        _
    $region88: #{tpu_custom_call.1} parent=5 // pred_fallthru
      _
    %p1061 = scmp.le.s32.totalorder 2, %s23
    // Predicated region
    $region93: #{tpu_custom_call.1} parent=5 // pred_check
      %p1062 = pneg %p1061
    $region94: #{tpu_custom_call.1} parent=5 // pred_check_branch
      %1064 = sbr.rel (%p1062) target = $region96
    $region95: #{tpu_custom_call.1} parent=5 // pred_region
      %s1065 = ssub.s32 %s23, 2
      // Predicated region
      $region97: #{tpu_custom_call.1} parent=95 // pred_check
        %p1066 = pneg %p414
      $region98: #{tpu_custom_call.1} parent=95 // pred_check_branch
        %1068 = sbr.rel (%p1066) target = $region100
      $region99: #{tpu_custom_call.1} parent=95 // pred_region
        %p1069 = scmp.lt.s32.totalorder %s29, 1
        %s1070 = scalar_select %p1069, %s29, 1
        %s1071 = smul.addr %s1070, 2
        %s1072 = smul.addr %s1071, 8
        %s1073 = scalar_lea.vmem %s17, %s1072
      $region100: #{tpu_custom_call.1} parent=95 // pred_fallthru
        _
    $region96: #{tpu_custom_call.1} parent=5 // pred_fallthru
      _
  $region6: #{tpu_custom_call.1} parent=0 // loop_footer
    %s27 = sadd.s32 1, %s23
  $region7: #{tpu_custom_call.1} parent=0 // loop_footer_branch
    %22 = sbr.rel target = $region3
  $region8: #{tpu_custom_call.1} parent=0 // loop_exit
    _

</llo_original>
